<compile_context>
chip_gen: v7x
topology: tpu7x:2x2x1
jax: 0.10.0
libtpu: 0.0.40
codegen_flags: <defaults>
</compile_context>

<pallas_src>
import jax
import jax.numpy as jnp
from jax.experimental import pallas as pl
from jax.experimental.pallas import tpu as pltpu

HIDDEN = 256      # first Linear output width (as in the module)
N_OUT = 2         # number of classes (as in the module)
N_PAD = 128       # lane-padded logits width; real logits live in columns [0, 2)
BN_EPS = 1e-5

_VMEM_LIMIT_BYTES = 48 * 1024 * 1024   # safe on v5e/v6e (128 MiB) and v7x (64 MiB)
_TILE_BUDGET_BYTES = 14 << 20          # per-buffer W1 tile; x2 (double buffer) < 48 MiB


def _default_n_slabs():
    """2 contiguous HIDDEN slabs on dual-TensorCore chips (v7x), else 1."""
    try:
        kind = jax.devices()[0].device_kind.lower()
        return 2 if ("v7" in kind or "7x" in kind) else 1
    except Exception:
        return 1


def _pick_tk(K, NH, itemsize, budget_bytes):
    """Largest multiple of 128 that divides K with a (tk, NH) tile under budget.

    Falls back to a budget-sized multiple of 128 (K then gets zero-padded once,
    at prep time, never per call)."""
    max_tk = max(128, (budget_bytes // (NH * itemsize)) // 128 * 128)
    best = 0
    d = 128
    top = min(K, max_tk)
    while d <= top:
        if K % d == 0:
            best = d
        d += 128
    if best:
        return best
    return min(max_tk, -(-K // 128) * 128)


# --------------------------------------------------------------------------- kernels
def _fc1_kernel(x_ref, w1_ref, s1_ref, sh1_ref, h_ref):
    """grid = (n_slabs 'parallel', K-reduction 'arbitrary').

    h_ref doubles as the f32 accumulator: its block index is constant across k,
    so the block stays VMEM-resident for the whole reduction."""
    k = pl.program_id(1)

    @pl.when(k == 0)
    def _():
        h_ref[...] = jnp.zeros_like(h_ref)

    h_ref[...] += jnp.dot(x_ref[...], w1_ref[...],
                          preferred_element_type=jnp.float32)

    @pl.when(k == pl.num_programs(1) - 1)
    def _():
        # Folded (Linear1 bias + BatchNorm1d(256)) affine, then LeakyReLU(0.1).
        h = h_ref[...] * s1_ref[...] + sh1_ref[...]
        h_ref[...] = jnp.where(h > 0, h, 0.1 * h)


def _fc2_kernel(h_ref, w2_ref, s2_ref, sh2_ref, out_ref):
    """Tiny epilogue: Linear(256, 2) (lane-padded) + folded BN(2) + Sigmoid."""
    # TODO(synk): Dropout(0.5) is stochastic in training mode; eval-mode identity here.
    y = jnp.dot(h_ref[...], w2_ref[...], preferred_element_type=jnp.float32)
    y = y * s2_ref[...] + sh2_ref[...]
    out_ref[...] = (1.0 / (1.0 + jnp.exp(-y))).astype(out_ref.dtype)


# ------------------------------------------------------------------- one-time prep
def prepare_head_params(params, *, weight_dtype=jnp.bfloat16, n_slabs=None, tk=None,
                        tile_budget_bytes=_TILE_BUDGET_BYTES):
    """One-time (model-load) preprocessing of the head weights.

    Returns a dict with streaming-ready arrays; img_cls_head() does NO weight
    reformatting per call."""
    w1, b1, g1, beta1, m1, v1, w2, b2, g2, beta2, m2, v2 = params
    K = w1.shape[0]

    if n_slabs is None:
        n_slabs = _default_n_slabs()
    assert HIDDEN % n_slabs == 0
    NH = HIDDEN // n_slabs
    assert NH % 128 == 0, "each HIDDEN slab must be lane-aligned"

    weight_dtype = jnp.dtype(weight_dtype)
    if tk is None:
        tk = _pick_tk(K, NH, weight_dtype.itemsize, tile_budget_bytes)
    assert tk % 128 == 0, "tk must be a multiple of 128 (lane dim of the x tile)"

    nk = -(-K // tk)
    Kp = nk * tk

    # ---- fold Linear1 bias + BatchNorm1d(256) (running stats) into scale/shift ----
    inv1 = g1 / jnp.sqrt(v1 + BN_EPS)
    s1 = inv1.reshape(1, HIDDEN).astype(jnp.float32)
    sh1 = ((b1 - m1) * inv1 + beta1).reshape(1, HIDDEN).astype(jnp.float32)

    # ---- W1 -> n_slabs CONTIGUOUS (Kp, NH) slabs in the streaming dtype (once) ----
    w1p = jnp.pad(w1.astype(weight_dtype), ((0, Kp - K), (0, 0)))
    w1_slabs = jnp.transpose(w1p.reshape(Kp, n_slabs, NH), (1, 0, 2))

    # ---- epilogue: Linear(256, 2) + BatchNorm1d(2), lane-padded to 128 ----
    w2p = jnp.zeros((HIDDEN, N_PAD), jnp.float32).at[:, :N_OUT].set(w2.astype(jnp.float32))
    inv2 = g2 / jnp.sqrt(v2 + BN_EPS)
    s2 = jnp.zeros((1, N_PAD), jnp.float32).at[0, :N_OUT].set(inv2)
    sh2 = jnp.zeros((1, N_PAD), jnp.float32).at[0, :N_OUT].set((b2 - m2) * inv2 + beta2)

    return dict(w1_slabs=w1_slabs, s1=s1, sh1=sh1, w2p=w2p, s2=s2, sh2=sh2,
                K=K, Kp=Kp, tk=tk, NH=NH, n_slabs=n_slabs, weight_dtype=weight_dtype)


# ----------------------------------------------------------------------- per call
def img_cls_head(x, prep):
    """x: (B, K) flattened backbone features. Returns (B, 2) probabilities."""
    B, K = x.shape
    assert K == prep["K"], f"expected K={prep['K']}, got {K}"
    Kp, tk = prep["Kp"], prep["tk"]
    NH, n_slabs = prep["NH"], prep["n_slabs"]
    wdt = prep["weight_dtype"]
    nk = Kp // tk

    # Stream x in the weight dtype (halves the x HBM stream in the bf16 path);
    # pad only if K needed padding at prep time or B is not sublane-aligned.
    Bp = max(8, -(-B // 8) * 8)
    xp = x.astype(wdt)
    if (Bp, Kp) != (B, K):
        xp = jnp.pad(xp, ((0, Bp - B), (0, Kp - K)))

    w_bytes = wdt.itemsize
    cost = pl.CostEstimate(
        flops=2 * Bp * Kp * HIDDEN,
        transcendentals=0,
        bytes_accessed=int(Kp * HIDDEN * w_bytes        # W1 stream (dominant term)
                           + n_slabs * Bp * Kp * w_bytes  # x, re-read once per slab
                           + Bp * HIDDEN * 4              # hidden output
                           + 2 * HIDDEN * 4))             # folded BN constants

    h = pl.pallas_call(
        _fc1_kernel,
        out_shape=jax.ShapeDtypeStruct((Bp, HIDDEN), jnp.float32),
        grid_spec=pltpu.PrefetchScalarGridSpec(
            num_scalar_prefetch=0,
            grid=(n_slabs, nk),
            in_specs=[
                pl.BlockSpec((Bp, tk), lambda j, k: (0, k)),        # x tile
                pl.BlockSpec((None, tk, NH), lambda j, k: (j, k, 0)),  # contiguous W1 slab tile
                pl.BlockSpec((1, NH), lambda j, k: (0, j)),          # folded scale1
                pl.BlockSpec((1, NH), lambda j, k: (0, j)),          # folded shift1
            ],
            out_specs=pl.BlockSpec((Bp, NH), lambda j, k: (0, j)),
        ),
        compiler_params=pltpu.CompilerParams(
            dimension_semantics=("parallel", "arbitrary"),
            vmem_limit_bytes=_VMEM_LIMIT_BYTES),
        cost_estimate=cost,
    )(xp, prep["w1_slabs"], prep["s1"], prep["sh1"])

    # ---- tiny epilogue: Linear(256, 2) + BatchNorm1d(2) + Sigmoid (lane-padded) ----
    out_padded = pl.pallas_call(
        _fc2_kernel,
        out_shape=jax.ShapeDtypeStruct((Bp, N_PAD), jnp.float32),
    )(h, prep["w2p"], prep["s2"], prep["sh2"])

    return out_padded[:B, :N_OUT]


# ---------------------------------------------------------------------- reference
def _reference(x, params):
    w1, b1, g1, beta1, m1, v1, w2, b2, g2, beta2, m2, v2 = params
    h = x @ w1 + b1
    h = (h - m1) / jnp.sqrt(v1 + BN_EPS) * g1 + beta1
    h = jnp.where(h > 0, h, 0.1 * h)
    y = h @ w2 + b2
    y = (y - m2) / jnp.sqrt(v2 + BN_EPS) * g2 + beta2
    return jax.nn.sigmoid(y)


if __name__ == "__main__":
    # Small, deterministic configuration. In the real model K = 256*52*52 = 692224;
    # here we exercise (a) the divisor-tiled path with both 1-slab and 2-slab
    # layouts at tight f32 tolerance and (b) the K/B-padded bf16 streaming path.
    def make_params(key, K):
        kw1, kb1, kw2, kb2 = jax.random.split(key, 4)
        lim1 = 1.0 / jnp.sqrt(jnp.float32(K))
        w1 = jax.random.uniform(kw1, (K, HIDDEN), jnp.float32, -lim1, lim1)
        b1 = jax.random.uniform(kb1, (HIDDEN,), jnp.float32, -lim1, lim1)
        g1 = jnp.ones((HIDDEN,), jnp.float32)
        beta1 = jnp.zeros((HIDDEN,), jnp.float32)
        m1 = jnp.zeros((HIDDEN,), jnp.float32)
        v1 = jnp.ones((HIDDEN,), jnp.float32)
        lim2 = 1.0 / jnp.sqrt(jnp.float32(HIDDEN))
        w2 = jax.random.uniform(kw2, (HIDDEN, N_OUT), jnp.float32, -lim2, lim2)
        b2 = jax.random.uniform(kb2, (N_OUT,), jnp.float32, -lim2, lim2)
        g2 = jnp.ones((N_OUT,), jnp.float32)
        beta2 = jnp.zeros((N_OUT,), jnp.float32)
        m2 = jnp.zeros((N_OUT,), jnp.float32)
        v2 = jnp.ones((N_OUT,), jnp.float32)
        return (w1, b1, g1, beta1, m1, v1, w2, b2, g2, beta2, m2, v2)

    key = jax.random.PRNGKey(0)
    kp1, kx1, kp2, kx2 = jax.random.split(key, 4)

    # --- Case 1 & 2: K divisible by the tile (no padding), f32 weights, tight tol ---
    K1, B1, TK1 = 2560, 8, 640         # 4 reduction steps
    params1 = make_params(kp1, K1)
    x1 = jax.random.normal(kx1, (B1, K1), jnp.float32)
    ref1 = _reference(x1, params1)

    for n_slabs in (1, 2):             # single-TC layout and v7x 2-slab layout
        prep = prepare_head_params(params1, weight_dtype=jnp.float32,
                                   n_slabs=n_slabs, tk=TK1)
        out = jax.block_until_ready(img_cls_head(x1, prep))
        assert out.shape == (B1, N_OUT)
        assert jnp.allclose(out, ref1, atol=1e-5, rtol=1e-5), \
            f"f32 mismatch vs reference (n_slabs={n_slabs})"

    # --- Case 3: non-divisible K and B (padding path), bf16 streaming, default slabs ---
    K2, B2, TK2 = 2500, 5, 640
    params2 = make_params(kp2, K2)
    x2 = jax.random.normal(kx2, (B2, K2), jnp.float32)
    ref2 = _reference(x2, params2)
    prep2 = prepare_head_params(params2, weight_dtype=jnp.bfloat16, tk=TK2)
    out2 = jax.block_until_ready(img_cls_head(x2, prep2))
    assert out2.shape == (B2, N_OUT)
    assert jnp.allclose(out2, ref2, atol=2e-2, rtol=2e-2), "bf16 mismatch vs reference"

    print("KERNEL_OK")
</pallas_src>

<mosaic_0001>
module attributes {stable_mosaic.version = 11 : i64} {
  func.func @_fc1_kernel(%arg0: i32, %arg1: i32, %arg2: memref<8x640xf32, #tpu.memory_space<vmem>>, %arg3: memref<1x640x256xf32, #tpu.memory_space<vmem>>, %arg4: memref<1x256xf32, #tpu.memory_space<vmem>>, %arg5: memref<1x256xf32, #tpu.memory_space<vmem>>, %arg6: memref<8x256xf32, #tpu.memory_space<vmem>>) attributes {dimension_semantics = [#tpu.dimension_semantics<parallel>, #tpu.dimension_semantics<arbitrary>], iteration_bounds = array<i64: 1, 4>, scalar_prefetch = 0 : i64, scratch_operands = 0 : i64, tpu.core_type = #tpu.core_type<tc>, window_params = [{transform_indices = @transform_0, window_bounds = array<i64: 8, 640>}, {transform_indices = @transform_1, window_bounds = array<i64: 1, 640, 256>}, {transform_indices = @transform_2, window_bounds = array<i64: 1, 256>}, {transform_indices = @transform_3, window_bounds = array<i64: 1, 256>}, {transform_indices = @transform_4, window_bounds = array<i64: 8, 256>}]} {
    %c0_i32 = arith.constant 0 : i32
    %0 = arith.cmpi eq, %arg1, %c0_i32 : i32
    %1 = arith.extui %0 : i1 to i32
    %c0_i32_0 = arith.constant 0 : i32
    %2 = arith.cmpi ne, %1, %c0_i32_0 : i32
    scf.if %2 {
      %cst_10 = arith.constant 0.000000e+00 : f32
      %13 = vector.broadcast %cst_10 : f32 to vector<8x256xf32>
      %c0_11 = arith.constant 0 : index
      %c0_12 = arith.constant 0 : index
      %14 = vector.load %arg6[%c0_11, %c0_12] : memref<8x256xf32, #tpu.memory_space<vmem>>, vector<8x256xf32>
      tpu.vector_store %arg6[%c0_11, %c0_12], %13 {strides = array<i32>} : memref<8x256xf32, #tpu.memory_space<vmem>>, vector<8x256xf32>,
    } else {
    }
    %c0 = arith.constant 0 : index
    %c0_1 = arith.constant 0 : index
    %3 = vector.load %arg6[%c0, %c0_1] : memref<8x256xf32, #tpu.memory_space<vmem>>, vector<8x256xf32>
    %c0_2 = arith.constant 0 : index
    %c0_3 = arith.constant 0 : index
    %4 = vector.load %arg2[%c0_2, %c0_3] : memref<8x640xf32, #tpu.memory_space<vmem>>, vector<8x640xf32>
    %c0_4 = arith.constant 0 : index
    %c0_5 = arith.constant 0 : index
    %c0_6 = arith.constant 0 : index
    %5 = vector.load %arg3[%c0_4, %c0_5, %c0_6] : memref<1x640x256xf32, #tpu.memory_space<vmem>>, vector<1x640x256xf32>
    %6 = vector.shape_cast %5 : vector<1x640x256xf32> to vector<640x256xf32>
    %cst = arith.constant dense<0.000000e+00> : vector<8x256xf32>
    %7 = tpu.matmul %4, %6, %cst {dimension_numbers = #tpu.dot_dimension_numbers<[1], [0], [0], [1], [0, 0, 1, 1], [], []>} : vector<8x640xf32>, vector<640x256xf32>, vector<8x256xf32> -> vector<8x256xf32>
    %8 = arith.addf %3, %7 : vector<8x256xf32>
    %c0_7 = arith.constant 0 : index
    %c0_8 = arith.constant 0 : index
    %9 = vector.load %arg6[%c0_7, %c0_8] : memref<8x256xf32, #tpu.memory_space<vmem>>, vector<8x256xf32>
    tpu.vector_store %arg6[%c0_7, %c0_8], %8 {strides = array<i32>} : memref<8x256xf32, #tpu.memory_space<vmem>>, vector<8x256xf32>,
    %c3_i32 = arith.constant 3 : i32
    %10 = arith.cmpi eq, %arg1, %c3_i32 : i32
    %11 = arith.extui %10 : i1 to i32
    %c0_i32_9 = arith.constant 0 : i32
    %12 = arith.cmpi ne, %11, %c0_i32_9 : i32
    scf.if %12 {
      %c0_10 = arith.constant 0 : index
      %c0_11 = arith.constant 0 : index
      %13 = vector.load %arg6[%c0_10, %c0_11] : memref<8x256xf32, #tpu.memory_space<vmem>>, vector<8x256xf32>
      %c0_12 = arith.constant 0 : index
      %c0_13 = arith.constant 0 : index
      %14 = vector.load %arg4[%c0_12, %c0_13] : memref<1x256xf32, #tpu.memory_space<vmem>>, vector<1x256xf32>
      %15 = vector.broadcast %14 : vector<1x256xf32> to vector<8x256xf32>
      %16 = arith.mulf %13, %15 : vector<8x256xf32>
      %c0_14 = arith.constant 0 : index
      %c0_15 = arith.constant 0 : index
      %17 = vector.load %arg5[%c0_14, %c0_15] : memref<1x256xf32, #tpu.memory_space<vmem>>, vector<1x256xf32>
      %18 = vector.broadcast %17 : vector<1x256xf32> to vector<8x256xf32>
      %19 = arith.addf %16, %18 : vector<8x256xf32>
      %cst_16 = arith.constant 0.000000e+00 : f32
      %20 = vector.broadcast %cst_16 : f32 to vector<8x256xf32>
      %21 = arith.cmpf ogt, %19, %20 : vector<8x256xf32>
      %cst_17 = arith.constant 1.000000e-01 : f32
      %22 = vector.broadcast %cst_17 : f32 to vector<8x256xf32>
      %23 = arith.mulf %22, %19 : vector<8x256xf32>
      %24 = arith.select %21, %19, %23 : vector<8x256xi1>, vector<8x256xf32>
      %c0_18 = arith.constant 0 : index
      %c0_19 = arith.constant 0 : index
      %25 = vector.load %arg6[%c0_18, %c0_19] : memref<8x256xf32, #tpu.memory_space<vmem>>, vector<8x256xf32>
      tpu.vector_store %arg6[%c0_18, %c0_19], %24 {strides = array<i32>} : memref<8x256xf32, #tpu.memory_space<vmem>>, vector<8x256xf32>,
    } else {
    }
    return
  }
  func.func @transform_0(%arg0: i32, %arg1: i32) -> (i32, i32) {
    %c0_i32 = arith.constant 0 : i32
    %c0_i32_0 = arith.constant 0 : i32
    return %c0_i32, %arg1 : i32, i32
  }
  func.func @transform_1(%arg0: i32, %arg1: i32) -> (i32, i32, i32) {
    %c0_i32 = arith.constant 0 : i32
    %c0_i32_0 = arith.constant 0 : i32
    return %arg0, %arg1, %c0_i32 : i32, i32, i32
  }
  func.func @transform_2(%arg0: i32, %arg1: i32) -> (i32, i32) {
    %c0_i32 = arith.constant 0 : i32
    %c0_i32_0 = arith.constant 0 : i32
    return %c0_i32, %arg0 : i32, i32
  }
  func.func @transform_3(%arg0: i32, %arg1: i32) -> (i32, i32) {
    %c0_i32 = arith.constant 0 : i32
    %c0_i32_0 = arith.constant 0 : i32
    return %c0_i32, %arg0 : i32, i32
  }
  func.func @transform_4(%arg0: i32, %arg1: i32) -> (i32, i32) {
    %c0_i32 = arith.constant 0 : i32
    %c0_i32_0 = arith.constant 0 : i32
    return %c0_i32, %arg0 : i32, i32
  }
}

</mosaic_0001>

<llo_original>
// kernel: tpu_custom_call.1
$region0: #{tpu_custom_call.1}
  #allocation0 [shape = 'u32[]', space=smem, size = 0x4, offset = 0x4, fixed_abs, tag = 'smem constant byte address 0x4 - core index']
  #allocation1 [shape = 'u32[144,128]{1,0:T(1,128)}', space=vmem, size = 0x12000, scoped, tag = 'internal scratch']
  %s0 = inlined_call_operand.hbm [shape: f32[8,2560], index: 0, kind: input, shape index: {}]
  %s1 = inlined_call_operand.hbm [shape: f32[1,2560,256], index: 1, kind: input, shape index: {}]
  %s2 = inlined_call_operand.hbm [shape: f32[1,256], index: 2, kind: input, shape index: {}]
  %s3 = inlined_call_operand.hbm [shape: f32[1,256], index: 3, kind: input, shape index: {}]
  %s4 = inlined_call_operand.hbm [shape: f32[8,256], index: 4, kind: output, shape index: {}]
  %s5 = sld [smem:[#allocation0]]
  $region73: #{tpu_custom_call.1} parent=0
    _
  %s7 = ssub.s32 1, %s5
  %s8 = scalar_select 0, %s7, %s5
  $region1: #{tpu_custom_call.1} parent=0
    #allocation2 [shape = 'u8[40960]{0}', space=vmem, size = 0xa000, scoped, tag = 'input window, operand 0']
    #allocation3 [shape = 's32[2]{0}', space=sflag, size = 0x8, scoped, tag = 'scoped memory for tpu_custom_call.1']
    #allocation4 [shape = 's32[2]{0}', space=sflag, size = 0x8, scoped, tag = 'scoped memory for tpu_custom_call.1']
    #allocation5 [shape = 'u8[1310720]{0}', space=vmem, size = 0x140000, scoped, tag = 'input window, operand 1']
    #allocation6 [shape = 's32[2]{0}', space=sflag, size = 0x8, scoped, tag = 'scoped memory for tpu_custom_call.1']
    #allocation7 [shape = 'u8[1024]{0}', space=vmem, size = 0x400, scoped, tag = 'input window, operand 2, single buffered']
    #allocation8 [shape = 'u8[1024]{0}', space=vmem, size = 0x400, scoped, tag = 'input window, operand 3, single buffered']
    #allocation9 [shape = 's32[1]{0}', space=sflag, size = 0x4, scoped, tag = 'scoped memory for tpu_custom_call.1']
    #allocation10 [shape = 'u8[8192]{0}', space=vmem, size = 0x2000, scoped, tag = 'output window, operand 0, single buffered']
    %9 = vsyncpa [#allocation3], 0
    %s10 = scalar_lea.sflag [#allocation3], 1
    %11 = vsyncpa %s10, 0
    %12 = vsyncpa [#allocation6], 0
    %s13 = scalar_lea.sflag [#allocation6], 1
    %14 = vsyncpa %s13, 0
    %15 = vsyncpa [#allocation9], 0
    %16 = vsyncpa [#allocation4], 0
    loop: start=0, step=1, limit=6
    $region2: #{tpu_custom_call.1} parent=1 // loop_pre_header
      _
    $region3: #{tpu_custom_call.1} parent=1 // loop_header
      %s18 = sphi 0, %s22
      %p19 = scmp.ge.s32.totalorder %s18, 6
      %s25 = sphi 0, %s37
      %s26 = sphi 0, %s33
      %s27 = sphi 0, %s25
      %s28 = sphi 0, %s26
      %s29 = sphi 0, %s27
      %s30 = sphi 0, %s28
      %s40 = sphi 0, %s42
      %s43 = sphi 0, %s40
      %s44 = sphi 0, %s43
      %s60 = sphi 0, %s44
      %s68 = sphi 0, %s70
      %s71 = sphi 0, %s68
      %s72 = sphi 0, %s71
      %s88 = sphi 0, %s72
      %s94 = sphi 0, %s96
      %s97 = sphi 0, %s94
      %s98 = sphi 0, %s97
      %s114 = sphi 0, %s98
      %s120 = sphi 0, %s122
      %s123 = sphi 0, %s120
      %s124 = sphi 0, %s123
      %s140 = sphi 0, %s124
      %s146 = sphi 0, %s148
      %s149 = sphi 0, %s146
      %s150 = sphi 0, %s149
      %s166 = sphi 0, %s150
    $region4: #{tpu_custom_call.1} parent=1 // loop_header_branch
      %21 = sbr.rel (%p19) target = $region8
    $region5: #{tpu_custom_call.1} parent=1 // loop_body
      %s23 = ssub.s32 %s18, 1
      %s24 = ssub.s32 %s18, 2
      %s31 = sadd.s32 1, %s26
      %p32 = scmp.ge.s32.totalorder %s31, 4
      %s33 = scalar_select %p32, 0, %s31
      %s34 = sadd.s32 1, %s25
      %s35 = scalar_select %p32, %s34, %s25
      %p36 = scmp.ge.s32.totalorder %s35, 1
      %s37 = scalar_select %p36, 0, %s35
      %s38 = ssub.s32 %s26, %s33
      %p39 = scmp.eq.s32.totalorder %s38, 0
      %s41 = sadd.s32 %s40, 1
      %s42 = scalar_select %p39, %s40, %s41
      %p45 = pneg %p39
      %p46 = scmp.eq.s32.totalorder %s18, 3
      %p47 = por %p45, %p46
      %p48 = scmp.ne.s32.totalorder %s40, %s43
      %p49 = scmp.eq.s32.totalorder %s18, 0
      %p50 = por %p48, %p49
      %p51 = scmp.ne.s32.totalorder %s40, %s43
      %p52 = scmp.eq.s32.totalorder %s23, 3
      %p53 = por %p51, %p52
      %p54 = scmp.ne.s32.totalorder %s43, %s44
      %p55 = scmp.eq.s32.totalorder %s23, 0
      %p56 = por %p54, %p55
      %p57 = scmp.ne.s32.totalorder %s43, %s44
      %p58 = scmp.eq.s32.totalorder %s24, 3
      %p59 = por %p57, %p58
      %p61 = scmp.ne.s32.totalorder %s44, %s60
      %p62 = scmp.eq.s32.totalorder %s24, 0
      %p63 = por %p61, %p62
      %s64 = ssub.s32 %s25, %s37
      %s65 = ssub.s32 %s26, %s33
      %s66 = sor.u32 %s64, %s65
      %p67 = scmp.eq.s32.totalorder %s66, 0
      %s69 = sadd.s32 %s68, 1
      %s70 = scalar_select %p67, %s68, %s69
      %p73 = pneg %p67
      %p74 = scmp.eq.s32.totalorder %s18, 3
      %p75 = por %p73, %p74
      %p76 = scmp.ne.s32.totalorder %s68, %s71
      %p77 = scmp.eq.s32.totalorder %s18, 0
      %p78 = por %p76, %p77
      %p79 = scmp.ne.s32.totalorder %s68, %s71
      %p80 = scmp.eq.s32.totalorder %s23, 3
      %p81 = por %p79, %p80
      %p82 = scmp.ne.s32.totalorder %s71, %s72
      %p83 = scmp.eq.s32.totalorder %s23, 0
      %p84 = por %p82, %p83
      %p85 = scmp.ne.s32.totalorder %s71, %s72
      %p86 = scmp.eq.s32.totalorder %s24, 3
      %p87 = por %p85, %p86
      %p89 = scmp.ne.s32.totalorder %s72, %s88
      %p90 = scmp.eq.s32.totalorder %s24, 0
      %p91 = por %p89, %p90
      %s92 = ssub.s32 %s25, %s37
      %p93 = scmp.eq.s32.totalorder %s92, 0
      %s95 = sadd.s32 %s94, 1
      %s96 = scalar_select %p93, %s94, %s95
      %p99 = pneg %p93
      %p100 = scmp.eq.s32.totalorder %s18, 3
      %p101 = por %p99, %p100
      %p102 = scmp.ne.s32.totalorder %s94, %s97
      %p103 = scmp.eq.s32.totalorder %s18, 0
      %p104 = por %p102, %p103
      %p105 = scmp.ne.s32.totalorder %s94, %s97
      %p106 = scmp.eq.s32.totalorder %s23, 3
      %p107 = por %p105, %p106
      %p108 = scmp.ne.s32.totalorder %s97, %s98
      %p109 = scmp.eq.s32.totalorder %s23, 0
      %p110 = por %p108, %p109
      %p111 = scmp.ne.s32.totalorder %s97, %s98
      %p112 = scmp.eq.s32.totalorder %s24, 3
      %p113 = por %p111, %p112
      %p115 = scmp.ne.s32.totalorder %s98, %s114
      %p116 = scmp.eq.s32.totalorder %s24, 0
      %p117 = por %p115, %p116
      %s118 = ssub.s32 %s25, %s37
      %p119 = scmp.eq.s32.totalorder %s118, 0
      %s121 = sadd.s32 %s120, 1
      %s122 = scalar_select %p119, %s120, %s121
      %p125 = pneg %p119
      %p126 = scmp.eq.s32.totalorder %s18, 3
      %p127 = por %p125, %p126
      %p128 = scmp.ne.s32.totalorder %s120, %s123
      %p129 = scmp.eq.s32.totalorder %s18, 0
      %p130 = por %p128, %p129
      %p131 = scmp.ne.s32.totalorder %s120, %s123
      %p132 = scmp.eq.s32.totalorder %s23, 3
      %p133 = por %p131, %p132
      %p134 = scmp.ne.s32.totalorder %s123, %s124
      %p135 = scmp.eq.s32.totalorder %s23, 0
      %p136 = por %p134, %p135
      %p137 = scmp.ne.s32.totalorder %s123, %s124
      %p138 = scmp.eq.s32.totalorder %s24, 3
      %p139 = por %p137, %p138
      %p141 = scmp.ne.s32.totalorder %s124, %s140
      %p142 = scmp.eq.s32.totalorder %s24, 0
      %p143 = por %p141, %p142
      %s144 = ssub.s32 %s25, %s37
      %p145 = scmp.eq.s32.totalorder %s144, 0
      %s147 = sadd.s32 %s146, 1
      %s148 = scalar_select %p145, %s146, %s147
      %p151 = pneg %p145
      %p152 = scmp.eq.s32.totalorder %s18, 3
      %p153 = por %p151, %p152
      %p154 = scmp.ne.s32.totalorder %s146, %s149
      %p155 = scmp.eq.s32.totalorder %s18, 0
      %p156 = por %p154, %p155
      %p157 = scmp.ne.s32.totalorder %s146, %s149
      %p158 = scmp.eq.s32.totalorder %s23, 3
      %p159 = por %p157, %p158
      %p160 = scmp.ne.s32.totalorder %s149, %s150
      %p161 = scmp.eq.s32.totalorder %s23, 0
      %p162 = por %p160, %p161
      %p163 = scmp.ne.s32.totalorder %s149, %s150
      %p164 = scmp.eq.s32.totalorder %s24, 3
      %p165 = por %p163, %p164
      %p167 = scmp.ne.s32.totalorder %s150, %s166
      %p168 = scmp.eq.s32.totalorder %s24, 0
      %p169 = por %p167, %p168
      %p170 = scmp.le.s32.totalorder 1, %s18
      %p171 = scmp.lt.s32.totalorder %s18, 5
      %p172 = pnand %p170, %p171
      %p173 = pneg %p172
      // Predicated region
      $region9: #{tpu_custom_call.1} parent=5 // pred_check
        _
      $region10: #{tpu_custom_call.1} parent=5 // pred_check_branch
        %175 = sbr.rel (%p172) target = $region12
      $region11: #{tpu_custom_call.1} parent=5 // pred_region
        %s176 = ssub.s32 %s18, 1
        // Predicated region
        $region13: #{tpu_custom_call.1} parent=11 // pred_check
          %p177 = pneg %p110
        $region14: #{tpu_custom_call.1} parent=11 // pred_check_branch
          %179 = sbr.rel (%p177) target = $region16
        $region15: #{tpu_custom_call.1} parent=11 // pred_region
          %s180 = smul.u32 2, %s27
          %s182 = ssub.s32 32, 32
          %183 = vsyncadd [#allocation6], %s182
          %s184 = smul.addr %s180, 16
          %s185 = scalar_lea.hbm %s2, %s184
          %s187 = sshll.u32 [#allocation7], 4
          %s188 = int_to_ptr.vmem [resolvable:$true] %s187
          %190 = dma.hbm_to_vmem [thread:$0]  %s185, 32, %s188, [#allocation6]
        $region16: #{tpu_custom_call.1} parent=11 // pred_fallthru
          _
        // Predicated region
        $region17: #{tpu_custom_call.1} parent=11 // pred_check
          %p191 = pneg %p136
        $region18: #{tpu_custom_call.1} parent=11 // pred_check_branch
          %193 = sbr.rel (%p191) target = $region20
        $region19: #{tpu_custom_call.1} parent=11 // pred_region
          %s194 = smul.u32 2, %s27
          %s196 = ssub.s32 32, 32
          %197 = vsyncadd [#allocation9], %s196
          %s198 = smul.addr %s194, 16
          %s199 = scalar_lea.hbm %s3, %s198
          %s201 = sshll.u32 [#allocation8], 4
          %s202 = int_to_ptr.vmem [resolvable:$true] %s201
          %204 = dma.hbm_to_vmem [thread:$0]  %s199, 32, %s202, [#allocation9]
        $region20: #{tpu_custom_call.1} parent=11 // pred_fallthru
          _
      $region12: #{tpu_custom_call.1} parent=5 // pred_fallthru
        _
      %p205 = scmp.lt.s32.totalorder %s18, 4
      // Predicated region
      $region21: #{tpu_custom_call.1} parent=5 // pred_check
        %p206 = pneg %p205
      $region22: #{tpu_custom_call.1} parent=5 // pred_check_branch
        %208 = sbr.rel (%p206) target = $region24
      $region23: #{tpu_custom_call.1} parent=5 // pred_region
        // Predicated region
        $region25: #{tpu_custom_call.1} parent=23 // pred_check
          %p209 = pneg %p50
        $region26: #{tpu_custom_call.1} parent=23 // pred_check_branch
          %211 = sbr.rel (%p209) target = $region28
        $region27: #{tpu_custom_call.1} parent=23 // pred_region
          %s212 = sand.u32 %s40, 1
          %s213 = scalar_lea.sflag [#allocation3], %s212
          %s214 = sand.u32 %s40, 1
          %s215 = smul.addr %s214, 40
          %s216 = scalar_lea.vmem [#allocation2], %s215
          %s217 = smul.u32 5, %s26
          %s219 = ssub.s32 640, 640
          %220 = vsyncadd %s213, %s219
          %s221 = smul.addr %s217, 128
          %s222 = scalar_lea.hbm %s0, %s221
          %s224 = sshll.u32 %s216, 4
          %s225 = int_to_ptr.vmem [resolvable:$true] %s224
          %227 = dma.hbm_to_vmem [thread:$0]  %s222, 640, %s225, %s213
        $region28: #{tpu_custom_call.1} parent=23 // pred_fallthru
          _
        // Predicated region
        $region29: #{tpu_custom_call.1} parent=23 // pred_check
          %p228 = pneg %p78
        $region30: #{tpu_custom_call.1} parent=23 // pred_check_branch
          %230 = sbr.rel (%p228) target = $region32
        $region31: #{tpu_custom_call.1} parent=23 // pred_region
          %s231 = sand.u32 %s18, 1
          %s232 = scalar_lea.sflag [#allocation6], %s231
          %s233 = sand.u32 %s68, 1
          %s234 = smul.addr %s233, 1280
          %s235 = scalar_lea.vmem [#allocation5], %s234
          %s236 = smul.u32 80, %s26
          %s238 = ssub.s32 20480, 20480
          %239 = vsyncadd %s232, %s238
          %s240 = smul.addr %s236, 2
          %s241 = smul.addr %s25, 640
          %s242 = sadd.s32 %s240, %s241
          %s243 = smul.addr %s242, 128
          %s244 = scalar_lea.hbm %s1, %s243
          %s245 = sshll.u32 %s235, 4
          %s246 = int_to_ptr.vmem [resolvable:$true] %s245
          %251 = dma.hbm_to_vmem [thread:$0]  %s244, 20480, %s246, %s232, 256, 256, 16
        $region32: #{tpu_custom_call.1} parent=23 // pred_fallthru
          _
      $region24: #{tpu_custom_call.1} parent=5 // pred_fallthru
        _
      %p252 = scmp.le.s32.totalorder 1, %s18
      %p253 = scmp.lt.s32.totalorder %s18, 5
      %p254 = pnand %p252, %p253
      %p255 = pneg %p254
      // Predicated region
      $region33: #{tpu_custom_call.1} parent=5 // pred_check
        _
      $region34: #{tpu_custom_call.1} parent=5 // pred_check_branch
        %257 = sbr.rel (%p254) target = $region36
      $region35: #{tpu_custom_call.1} parent=5 // pred_region
        %s258 = ssub.s32 %s18, 1
        %s259 = sand.u32 %s43, 1
        %s260 = scalar_lea.sflag [#allocation3], %s259
        %s261 = sand.u32 %s43, 1
        %s262 = smul.addr %s261, 40
        %s263 = scalar_lea.vmem [#allocation2], %s262
        // Predicated region
        $region37: #{tpu_custom_call.1} parent=35 // pred_check
          %p264 = pneg %p56
        $region38: #{tpu_custom_call.1} parent=35 // pred_check_branch
          %266 = sbr.rel (%p264) target = $region40
        $region39: #{tpu_custom_call.1} parent=35 // pred_region
          %267 = dma.done %s260, 640
        $region40: #{tpu_custom_call.1} parent=35 // pred_fallthru
          _
        %s268 = sand.u32 %s23, 1
        %s269 = scalar_lea.sflag [#allocation6], %s268
        %s270 = sand.u32 %s71, 1
        %s271 = smul.addr %s270, 1280
        %s272 = scalar_lea.vmem [#allocation5], %s271
        // Predicated region
        $region41: #{tpu_custom_call.1} parent=35 // pred_check
          %p273 = pneg %p84
        $region42: #{tpu_custom_call.1} parent=35 // pred_check_branch
          %275 = sbr.rel (%p273) target = $region44
        $region43: #{tpu_custom_call.1} parent=35 // pred_region
          %276 = dma.done %s269, 20480
        $region44: #{tpu_custom_call.1} parent=35 // pred_fallthru
          _
        // Predicated region
        $region45: #{tpu_custom_call.1} parent=35 // pred_check
          %p277 = pneg %p110
        $region46: #{tpu_custom_call.1} parent=35 // pred_check_branch
          %279 = sbr.rel (%p277) target = $region48
        $region47: #{tpu_custom_call.1} parent=35 // pred_region
          %280 = dma.done [#allocation6], 32
        $region48: #{tpu_custom_call.1} parent=35 // pred_fallthru
          _
        // Predicated region
        $region49: #{tpu_custom_call.1} parent=35 // pred_check
          %p281 = pneg %p136
        $region50: #{tpu_custom_call.1} parent=35 // pred_check_branch
          %283 = sbr.rel (%p281) target = $region52
        $region51: #{tpu_custom_call.1} parent=35 // pred_region
          %284 = dma.done [#allocation9], 32
        $region52: #{tpu_custom_call.1} parent=35 // pred_fallthru
          _
        %s285 = sand.u32 %s43, 1
        %s286 = scalar_lea.sflag [#allocation3], %s285
        %s287 = sand.u32 %s43, 1
        %s288 = smul.addr %s287, 40
        %s289 = scalar_lea.vmem [#allocation2], %s288
        %p290 = pneg %p56
        %p291 = pneg %p53
        %s292 = sand.u32 %s23, 1
        %s293 = scalar_lea.sflag [#allocation6], %s292
        %s294 = sand.u32 %s71, 1
        %s295 = smul.addr %s294, 1280
        %s296 = scalar_lea.vmem [#allocation5], %s295
        %p297 = pneg %p84
        %p298 = pneg %p81
        %p299 = pneg %p110
        %p300 = pneg %p107
        %p301 = pneg %p136
        %p302 = pneg %p133
        %p303 = pneg %p162
        %p304 = pneg %p159
        %s305 = smul.u32 5, %s28
        %s306 = smul.u32 80, %s28
        %s307 = smul.u32 2, %s27
        %s308 = smul.u32 2, %s27
        %s309 = smul.u32 2, %s27
        %p310 = scmp.eq.s32.totalorder %s28, 0
        // Predicated region
        $region53: #{tpu_custom_call.1} parent=35 // pred_check
          %p311 = pneg %p310
        $region54: #{tpu_custom_call.1} parent=35 // pred_check_branch
          %313 = sbr.rel (%p311) target = $region56
        $region55: #{tpu_custom_call.1} parent=35 // pred_region
          %314 = vst [vmem:[#allocation10] sm:$0xff] 0.0
          %315 = vst [vmem:[#allocation10 + $0x8] sm:$0xff] 0.0
        $region56: #{tpu_custom_call.1} parent=35 // pred_fallthru
          _
        %v316 = vld [vmem:[#allocation10] sm:$0xff]
        %v317 = vld [vmem:[#allocation10 + $0x8] sm:$0xff]
        %v318 = vld [vmem:[%s263] sm:$0xff]
        %v319 = vld [vmem:[%s263 + $0x8] sm:$0xff]
        %v320 = vld [vmem:[%s263 + $0x10] sm:$0xff]
        %v321 = vld [vmem:[%s263 + $0x18] sm:$0xff]
        %v322 = vld [vmem:[%s263 + $0x20] sm:$0xff]
        %v323 = vld [vmem:[%s272] sm:$0xff]
        %v324 = vld [vmem:[%s272 + $0x8] sm:$0xff]
        %v325 = vld [vmem:[%s272 + $0x10] sm:$0xff]
        %v326 = vld [vmem:[%s272 + $0x18] sm:$0xff]
        %v327 = vld [vmem:[%s272 + $0x20] sm:$0xff]
        %v328 = vld [vmem:[%s272 + $0x28] sm:$0xff]
        %v329 = vld [vmem:[%s272 + $0x30] sm:$0xff]
        %v330 = vld [vmem:[%s272 + $0x38] sm:$0xff]
        %v331 = vld [vmem:[%s272 + $0x40] sm:$0xff]
        %v332 = vld [vmem:[%s272 + $0x48] sm:$0xff]
        %v333 = vld [vmem:[%s272 + $0x50] sm:$0xff]
        %v334 = vld [vmem:[%s272 + $0x58] sm:$0xff]
        %v335 = vld [vmem:[%s272 + $0x60] sm:$0xff]
        %v336 = vld [vmem:[%s272 + $0x68] sm:$0xff]
        %v337 = vld [vmem:[%s272 + $0x70] sm:$0xff]
        %v338 = vld [vmem:[%s272 + $0x78] sm:$0xff]
        %v339 = vld [vmem:[%s272 + $0x80] sm:$0xff]
        %v340 = vld [vmem:[%s272 + $0x88] sm:$0xff]
        %v341 = vld [vmem:[%s272 + $0x90] sm:$0xff]
        %v342 = vld [vmem:[%s272 + $0x98] sm:$0xff]
        %v343 = vld [vmem:[%s272 + $0xa0] sm:$0xff]
        %v344 = vld [vmem:[%s272 + $0xa8] sm:$0xff]
        %v345 = vld [vmem:[%s272 + $0xb0] sm:$0xff]
        %v346 = vld [vmem:[%s272 + $0xb8] sm:$0xff]
        %v347 = vld [vmem:[%s272 + $0xc0] sm:$0xff]
        %v348 = vld [vmem:[%s272 + $0xc8] sm:$0xff]
        %v349 = vld [vmem:[%s272 + $0xd0] sm:$0xff]
        %v350 = vld [vmem:[%s272 + $0xd8] sm:$0xff]
        %v351 = vld [vmem:[%s272 + $0xe0] sm:$0xff]
        %v352 = vld [vmem:[%s272 + $0xe8] sm:$0xff]
        %v353 = vld [vmem:[%s272 + $0xf0] sm:$0xff]
        %v354 = vld [vmem:[%s272 + $0xf8] sm:$0xff]
        %v355 = vld [vmem:[%s272 + $0x100] sm:$0xff]
        %v356 = vld [vmem:[%s272 + $0x108] sm:$0xff]
        %v357 = vld [vmem:[%s272 + $0x110] sm:$0xff]
        %v358 = vld [vmem:[%s272 + $0x118] sm:$0xff]
        %v359 = vld [vmem:[%s272 + $0x120] sm:$0xff]
        %v360 = vld [vmem:[%s272 + $0x128] sm:$0xff]
        %v361 = vld [vmem:[%s272 + $0x130] sm:$0xff]
        %v362 = vld [vmem:[%s272 + $0x138] sm:$0xff]
        %v363 = vld [vmem:[%s272 + $0x140] sm:$0xff]
        %v364 = vld [vmem:[%s272 + $0x148] sm:$0xff]
        %v365 = vld [vmem:[%s272 + $0x150] sm:$0xff]
        %v366 = vld [vmem:[%s272 + $0x158] sm:$0xff]
        %v367 = vld [vmem:[%s272 + $0x160] sm:$0xff]
        %v368 = vld [vmem:[%s272 + $0x168] sm:$0xff]
        %v369 = vld [vmem:[%s272 + $0x170] sm:$0xff]
        %v370 = vld [vmem:[%s272 + $0x178] sm:$0xff]
        %v371 = vld [vmem:[%s272 + $0x180] sm:$0xff]
        %v372 = vld [vmem:[%s272 + $0x188] sm:$0xff]
        %v373 = vld [vmem:[%s272 + $0x190] sm:$0xff]
        %v374 = vld [vmem:[%s272 + $0x198] sm:$0xff]
        %v375 = vld [vmem:[%s272 + $0x1a0] sm:$0xff]
        %v376 = vld [vmem:[%s272 + $0x1a8] sm:$0xff]
        %v377 = vld [vmem:[%s272 + $0x1b0] sm:$0xff]
        %v378 = vld [vmem:[%s272 + $0x1b8] sm:$0xff]
        %v379 = vld [vmem:[%s272 + $0x1c0] sm:$0xff]
        %v380 = vld [vmem:[%s272 + $0x1c8] sm:$0xff]
        %v381 = vld [vmem:[%s272 + $0x1d0] sm:$0xff]
        %v382 = vld [vmem:[%s272 + $0x1d8] sm:$0xff]
        %v383 = vld [vmem:[%s272 + $0x1e0] sm:$0xff]
        %v384 = vld [vmem:[%s272 + $0x1e8] sm:$0xff]
        %v385 = vld [vmem:[%s272 + $0x1f0] sm:$0xff]
        %v386 = vld [vmem:[%s272 + $0x1f8] sm:$0xff]
        %v387 = vld [vmem:[%s272 + $0x200] sm:$0xff]
        %v388 = vld [vmem:[%s272 + $0x208] sm:$0xff]
        %v389 = vld [vmem:[%s272 + $0x210] sm:$0xff]
        %v390 = vld [vmem:[%s272 + $0x218] sm:$0xff]
        %v391 = vld [vmem:[%s272 + $0x220] sm:$0xff]
        %v392 = vld [vmem:[%s272 + $0x228] sm:$0xff]
        %v393 = vld [vmem:[%s272 + $0x230] sm:$0xff]
        %v394 = vld [vmem:[%s272 + $0x238] sm:$0xff]
        %v395 = vld [vmem:[%s272 + $0x240] sm:$0xff]
        %v396 = vld [vmem:[%s272 + $0x248] sm:$0xff]
        %v397 = vld [vmem:[%s272 + $0x250] sm:$0xff]
        %v398 = vld [vmem:[%s272 + $0x258] sm:$0xff]
        %v399 = vld [vmem:[%s272 + $0x260] sm:$0xff]
        %v400 = vld [vmem:[%s272 + $0x268] sm:$0xff]
        %v401 = vld [vmem:[%s272 + $0x270] sm:$0xff]
        %v402 = vld [vmem:[%s272 + $0x278] sm:$0xff]
        %v403 = vld [vmem:[%s272 + $0x280] sm:$0xff]
        %v404 = vld [vmem:[%s272 + $0x288] sm:$0xff]
        %v405 = vld [vmem:[%s272 + $0x290] sm:$0xff]
        %v406 = vld [vmem:[%s272 + $0x298] sm:$0xff]
        %v407 = vld [vmem:[%s272 + $0x2a0] sm:$0xff]
        %v408 = vld [vmem:[%s272 + $0x2a8] sm:$0xff]
        %v409 = vld [vmem:[%s272 + $0x2b0] sm:$0xff]
        %v410 = vld [vmem:[%s272 + $0x2b8] sm:$0xff]
        %v411 = vld [vmem:[%s272 + $0x2c0] sm:$0xff]
        %v412 = vld [vmem:[%s272 + $0x2c8] sm:$0xff]
        %v413 = vld [vmem:[%s272 + $0x2d0] sm:$0xff]
        %v414 = vld [vmem:[%s272 + $0x2d8] sm:$0xff]
        %v415 = vld [vmem:[%s272 + $0x2e0] sm:$0xff]
        %v416 = vld [vmem:[%s272 + $0x2e8] sm:$0xff]
        %v417 = vld [vmem:[%s272 + $0x2f0] sm:$0xff]
        %v418 = vld [vmem:[%s272 + $0x2f8] sm:$0xff]
        %v419 = vld [vmem:[%s272 + $0x300] sm:$0xff]
        %v420 = vld [vmem:[%s272 + $0x308] sm:$0xff]
        %v421 = vld [vmem:[%s272 + $0x310] sm:$0xff]
        %v422 = vld [vmem:[%s272 + $0x318] sm:$0xff]
        %v423 = vld [vmem:[%s272 + $0x320] sm:$0xff]
        %v424 = vld [vmem:[%s272 + $0x328] sm:$0xff]
        %v425 = vld [vmem:[%s272 + $0x330] sm:$0xff]
        %v426 = vld [vmem:[%s272 + $0x338] sm:$0xff]
        %v427 = vld [vmem:[%s272 + $0x340] sm:$0xff]
        %v428 = vld [vmem:[%s272 + $0x348] sm:$0xff]
        %v429 = vld [vmem:[%s272 + $0x350] sm:$0xff]
        %v430 = vld [vmem:[%s272 + $0x358] sm:$0xff]
        %v431 = vld [vmem:[%s272 + $0x360] sm:$0xff]
        %v432 = vld [vmem:[%s272 + $0x368] sm:$0xff]
        %v433 = vld [vmem:[%s272 + $0x370] sm:$0xff]
        %v434 = vld [vmem:[%s272 + $0x378] sm:$0xff]
        %v435 = vld [vmem:[%s272 + $0x380] sm:$0xff]
        %v436 = vld [vmem:[%s272 + $0x388] sm:$0xff]
        %v437 = vld [vmem:[%s272 + $0x390] sm:$0xff]
        %v438 = vld [vmem:[%s272 + $0x398] sm:$0xff]
        %v439 = vld [vmem:[%s272 + $0x3a0] sm:$0xff]
        %v440 = vld [vmem:[%s272 + $0x3a8] sm:$0xff]
        %v441 = vld [vmem:[%s272 + $0x3b0] sm:$0xff]
        %v442 = vld [vmem:[%s272 + $0x3b8] sm:$0xff]
        %v443 = vld [vmem:[%s272 + $0x3c0] sm:$0xff]
        %v444 = vld [vmem:[%s272 + $0x3c8] sm:$0xff]
        %v445 = vld [vmem:[%s272 + $0x3d0] sm:$0xff]
        %v446 = vld [vmem:[%s272 + $0x3d8] sm:$0xff]
        %v447 = vld [vmem:[%s272 + $0x3e0] sm:$0xff]
        %v448 = vld [vmem:[%s272 + $0x3e8] sm:$0xff]
        %v449 = vld [vmem:[%s272 + $0x3f0] sm:$0xff]
        %v450 = vld [vmem:[%s272 + $0x3f8] sm:$0xff]
        %v451 = vld [vmem:[%s272 + $0x400] sm:$0xff]
        %v452 = vld [vmem:[%s272 + $0x408] sm:$0xff]
        %v453 = vld [vmem:[%s272 + $0x410] sm:$0xff]
        %v454 = vld [vmem:[%s272 + $0x418] sm:$0xff]
        %v455 = vld [vmem:[%s272 + $0x420] sm:$0xff]
        %v456 = vld [vmem:[%s272 + $0x428] sm:$0xff]
        %v457 = vld [vmem:[%s272 + $0x430] sm:$0xff]
        %v458 = vld [vmem:[%s272 + $0x438] sm:$0xff]
        %v459 = vld [vmem:[%s272 + $0x440] sm:$0xff]
        %v460 = vld [vmem:[%s272 + $0x448] sm:$0xff]
        %v461 = vld [vmem:[%s272 + $0x450] sm:$0xff]
        %v462 = vld [vmem:[%s272 + $0x458] sm:$0xff]
        %v463 = vld [vmem:[%s272 + $0x460] sm:$0xff]
        %v464 = vld [vmem:[%s272 + $0x468] sm:$0xff]
        %v465 = vld [vmem:[%s272 + $0x470] sm:$0xff]
        %v466 = vld [vmem:[%s272 + $0x478] sm:$0xff]
        %v467 = vld [vmem:[%s272 + $0x480] sm:$0xff]
        %v468 = vld [vmem:[%s272 + $0x488] sm:$0xff]
        %v469 = vld [vmem:[%s272 + $0x490] sm:$0xff]
        %v470 = vld [vmem:[%s272 + $0x498] sm:$0xff]
        %v471 = vld [vmem:[%s272 + $0x4a0] sm:$0xff]
        %v472 = vld [vmem:[%s272 + $0x4a8] sm:$0xff]
        %v473 = vld [vmem:[%s272 + $0x4b0] sm:$0xff]
        %v474 = vld [vmem:[%s272 + $0x4b8] sm:$0xff]
        %v475 = vld [vmem:[%s272 + $0x4c0] sm:$0xff]
        %v476 = vld [vmem:[%s272 + $0x4c8] sm:$0xff]
        %v477 = vld [vmem:[%s272 + $0x4d0] sm:$0xff]
        %v478 = vld [vmem:[%s272 + $0x4d8] sm:$0xff]
        %v479 = vld [vmem:[%s272 + $0x4e0] sm:$0xff]
        %v480 = vld [vmem:[%s272 + $0x4e8] sm:$0xff]
        %v481 = vld [vmem:[%s272 + $0x4f0] sm:$0xff]
        %v482 = vld [vmem:[%s272 + $0x4f8] sm:$0xff]
        %483 = vmatprep.subr.mxu0 %v324
        %484 = vmatpush1.msra.mxu0 %v323
        %485 = vmatprep.subr.mxu0 %v326
        %486 = vmatpush1.msra.mxu0 %v325
        %487 = vmatprep.subr.mxu0 %v328
        %488 = vmatpush1.msra.mxu0 %v327
        %489 = vmatprep.subr.mxu0 %v330
        %490 = vmatpush1.msra.mxu0 %v329
        %491 = vmatprep.subr.mxu0 %v332
        %492 = vmatpush1.msra.mxu0 %v331
        %493 = vmatprep.subr.mxu0 %v334
        %494 = vmatpush1.msra.mxu0 %v333
        %495 = vmatprep.subr.mxu0 %v336
        %496 = vmatpush1.msra.mxu0 %v335
        %497 = vmatprep.subr.mxu0 %v338
        %498 = vmatpush1.msra.mxu0 %v337
        %499 = vmatprep.subr.mxu0 %v340
        %500 = vmatpush1.msra.mxu0 %v339
        %501 = vmatprep.subr.mxu0 %v342
        %502 = vmatpush1.msra.mxu0 %v341
        %503 = vmatprep.subr.mxu0 %v344
        %504 = vmatpush1.msra.mxu0 %v343
        %505 = vmatprep.subr.mxu0 %v346
        %506 = vmatpush1.msra.mxu0 %v345
        %507 = vmatprep.subr.mxu0 %v348
        %508 = vmatpush1.msra.mxu0 %v347
        %509 = vmatprep.subr.mxu0 %v350
        %510 = vmatpush1.msra.mxu0 %v349
        %511 = vmatprep.subr.mxu0 %v352
        %512 = vmatpush1.msra.mxu0 %v351
        %513 = vmatprep.subr.mxu0 %v354
        %514 = vmatpush1.msra.mxu0 %v353
        %515 = vmatprep.subr.mxu0 %v356
        %516 = vmatpush1.msra.mxu0 %v355
        %517 = vmatprep.subr.mxu0 %v358
        %518 = vmatpush1.msra.mxu0 %v357
        %519 = vmatprep.subr.mxu0 %v360
        %520 = vmatpush1.msra.mxu0 %v359
        %521 = vmatprep.subr.mxu0 %v362
        %522 = vmatpush1.msra.mxu0 %v361
        %523 = vmatprep.subr.mxu0 %v364
        %524 = vmatpush1.msra.mxu0 %v363
        %525 = vmatprep.subr.mxu0 %v366
        %526 = vmatpush1.msra.mxu0 %v365
        %527 = vmatprep.subr.mxu0 %v368
        %528 = vmatpush1.msra.mxu0 %v367
        %529 = vmatprep.subr.mxu0 %v370
        %530 = vmatpush1.msra.mxu0 %v369
        %531 = vmatprep.subr.mxu0 %v372
        %532 = vmatpush1.msra.mxu0 %v371
        %533 = vmatprep.subr.mxu0 %v374
        %534 = vmatpush1.msra.mxu0 %v373
        %535 = vmatprep.subr.mxu0 %v376
        %536 = vmatpush1.msra.mxu0 %v375
        %537 = vmatprep.subr.mxu0 %v378
        %538 = vmatpush1.msra.mxu0 %v377
        %539 = vmatprep.subr.mxu0 %v380
        %540 = vmatpush1.msra.mxu0 %v379
        %541 = vmatprep.subr.mxu0 %v382
        %542 = vmatpush1.msra.mxu0 %v381
        %543 = vmatprep.subr.mxu0 %v384
        %544 = vmatpush1.msra.mxu0 %v383
        %545 = vmatprep.subr.mxu0 %v386
        %546 = vmatpush1.msra.mxu0 %v385
        %547 = vmatprep.mubr.f32.mxu0 %v319
        %548 = vmatmul.mubr.f32.gmra.mrb[0].mxu0 %v318
        %v549 = vpop.f32.mrb[0].mxu0
        %v550 = vadd.f32 0.0, %v549
        %v551 = vpop.f32.mrb[0].mxu0
        %v552 = vadd.f32 0.0, %v551
        %553 = vdwg.mxu0
        %554 = vmatprep.subr.mxu0 %v388
        %555 = vmatpush1.msra.mxu0 %v387
        %556 = vmatprep.subr.mxu0 %v390
        %557 = vmatpush1.msra.mxu0 %v389
        %558 = vmatprep.subr.mxu0 %v392
        %559 = vmatpush1.msra.mxu0 %v391
        %560 = vmatprep.subr.mxu0 %v394
        %561 = vmatpush1.msra.mxu0 %v393
        %562 = vmatprep.subr.mxu0 %v396
        %563 = vmatpush1.msra.mxu0 %v395
        %564 = vmatprep.subr.mxu0 %v398
        %565 = vmatpush1.msra.mxu0 %v397
        %566 = vmatprep.subr.mxu0 %v400
        %567 = vmatpush1.msra.mxu0 %v399
        %568 = vmatprep.subr.mxu0 %v402
        %569 = vmatpush1.msra.mxu0 %v401
        %570 = vmatprep.subr.mxu0 %v404
        %571 = vmatpush1.msra.mxu0 %v403
        %572 = vmatprep.subr.mxu0 %v406
        %573 = vmatpush1.msra.mxu0 %v405
        %574 = vmatprep.subr.mxu0 %v408
        %575 = vmatpush1.msra.mxu0 %v407
        %576 = vmatprep.subr.mxu0 %v410
        %577 = vmatpush1.msra.mxu0 %v409
        %578 = vmatprep.subr.mxu0 %v412
        %579 = vmatpush1.msra.mxu0 %v411
        %580 = vmatprep.subr.mxu0 %v414
        %581 = vmatpush1.msra.mxu0 %v413
        %582 = vmatprep.subr.mxu0 %v416
        %583 = vmatpush1.msra.mxu0 %v415
        %584 = vmatprep.subr.mxu0 %v418
        %585 = vmatpush1.msra.mxu0 %v417
        %586 = vmatprep.subr.mxu0 %v420
        %587 = vmatpush1.msra.mxu0 %v419
        %588 = vmatprep.subr.mxu0 %v422
        %589 = vmatpush1.msra.mxu0 %v421
        %590 = vmatprep.subr.mxu0 %v424
        %591 = vmatpush1.msra.mxu0 %v423
        %592 = vmatprep.subr.mxu0 %v426
        %593 = vmatpush1.msra.mxu0 %v425
        %594 = vmatprep.subr.mxu0 %v428
        %595 = vmatpush1.msra.mxu0 %v427
        %596 = vmatprep.subr.mxu0 %v430
        %597 = vmatpush1.msra.mxu0 %v429
        %598 = vmatprep.subr.mxu0 %v432
        %599 = vmatpush1.msra.mxu0 %v431
        %600 = vmatprep.subr.mxu0 %v434
        %601 = vmatpush1.msra.mxu0 %v433
        %602 = vmatprep.subr.mxu0 %v436
        %603 = vmatpush1.msra.mxu0 %v435
        %604 = vmatprep.subr.mxu0 %v438
        %605 = vmatpush1.msra.mxu0 %v437
        %606 = vmatprep.subr.mxu0 %v440
        %607 = vmatpush1.msra.mxu0 %v439
        %608 = vmatprep.subr.mxu0 %v442
        %609 = vmatpush1.msra.mxu0 %v441
        %610 = vmatprep.subr.mxu0 %v444
        %611 = vmatpush1.msra.mxu0 %v443
        %612 = vmatprep.subr.mxu0 %v446
        %613 = vmatpush1.msra.mxu0 %v445
        %614 = vmatprep.subr.mxu0 %v448
        %615 = vmatpush1.msra.mxu0 %v447
        %616 = vmatprep.subr.mxu0 %v450
        %617 = vmatpush1.msra.mxu0 %v449
        %618 = vmatprep.mubr.f32.mxu0 %v321
        %619 = vmatmul.mubr.f32.gmra.mrb[0].mxu0 %v320
        %v620 = vpop.f32.mrb[0].mxu0
        %v621 = vadd.f32 %v550, %v620
        %v622 = vpop.f32.mrb[0].mxu0
        %v623 = vadd.f32 %v552, %v622
        %624 = vdwg.mxu0
        %625 = vmatprep.subr.mxu0 %v452
        %626 = vmatpush1.msra.mxu0 %v451
        %627 = vmatprep.subr.mxu0 %v454
        %628 = vmatpush1.msra.mxu0 %v453
        %629 = vmatprep.subr.mxu0 %v456
        %630 = vmatpush1.msra.mxu0 %v455
        %631 = vmatprep.subr.mxu0 %v458
        %632 = vmatpush1.msra.mxu0 %v457
        %633 = vmatprep.subr.mxu0 %v460
        %634 = vmatpush1.msra.mxu0 %v459
        %635 = vmatprep.subr.mxu0 %v462
        %636 = vmatpush1.msra.mxu0 %v461
        %637 = vmatprep.subr.mxu0 %v464
        %638 = vmatpush1.msra.mxu0 %v463
        %639 = vmatprep.subr.mxu0 %v466
        %640 = vmatpush1.msra.mxu0 %v465
        %641 = vmatprep.subr.mxu0 %v468
        %642 = vmatpush1.msra.mxu0 %v467
        %643 = vmatprep.subr.mxu0 %v470
        %644 = vmatpush1.msra.mxu0 %v469
        %645 = vmatprep.subr.mxu0 %v472
        %646 = vmatpush1.msra.mxu0 %v471
        %647 = vmatprep.subr.mxu0 %v474
        %648 = vmatpush1.msra.mxu0 %v473
        %649 = vmatprep.subr.mxu0 %v476
        %650 = vmatpush1.msra.mxu0 %v475
        %651 = vmatprep.subr.mxu0 %v478
        %652 = vmatpush1.msra.mxu0 %v477
        %653 = vmatprep.subr.mxu0 %v480
        %654 = vmatpush1.msra.mxu0 %v479
        %655 = vmatprep.subr.mxu0 %v482
        %656 = vmatpush1.msra.mxu0 %v481
        %657 = vmatprep.subr.mxu0 0.0
        %658 = vmatpush1.msra.mxu0 0.0
        %659 = vmatprep.subr.mxu0 0.0
        %660 = vmatpush1.msra.mxu0 0.0
        %661 = vmatprep.subr.mxu0 0.0
        %662 = vmatpush1.msra.mxu0 0.0
        %663 = vmatprep.subr.mxu0 0.0
        %664 = vmatpush1.msra.mxu0 0.0
        %665 = vmatprep.subr.mxu0 0.0
        %666 = vmatpush1.msra.mxu0 0.0
        %667 = vmatprep.subr.mxu0 0.0
        %668 = vmatpush1.msra.mxu0 0.0
        %669 = vmatprep.subr.mxu0 0.0
        %670 = vmatpush1.msra.mxu0 0.0
        %671 = vmatprep.subr.mxu0 0.0
        %672 = vmatpush1.msra.mxu0 0.0
        %673 = vmatprep.subr.mxu0 0.0
        %674 = vmatpush1.msra.mxu0 0.0
        %675 = vmatprep.subr.mxu0 0.0
        %676 = vmatpush1.msra.mxu0 0.0
        %677 = vmatprep.subr.mxu0 0.0
        %678 = vmatpush1.msra.mxu0 0.0
        %679 = vmatprep.subr.mxu0 0.0
        %680 = vmatpush1.msra.mxu0 0.0
        %681 = vmatprep.subr.mxu0 0.0
        %682 = vmatpush1.msra.mxu0 0.0
        %683 = vmatprep.subr.mxu0 0.0
        %684 = vmatpush1.msra.mxu0 0.0
        %685 = vmatprep.subr.mxu0 0.0
        %686 = vmatpush1.msra.mxu0 0.0
        %687 = vmatprep.subr.mxu0 0.0
        %688 = vmatpush1.msra.mxu0 0.0
        %689 = vmatprep.mubr.f32.mxu0 0.0
        %690 = vmatmul.mubr.f32.gmra.mrb[0].mxu0 %v322
        %v691 = vpop.f32.mrb[0].mxu0
        %v692 = vadd.f32 %v621, %v691
        %v693 = vpop.f32.mrb[0].mxu0
        %v694 = vadd.f32 %v623, %v693
        %695 = vdwg.mxu0
        %v696 = vadd.f32 %v316, %v692
        %v697 = vadd.f32 %v317, %v694
        %698 = vst [vmem:[#allocation10] sm:$0xff] %v696
        %699 = vst [vmem:[#allocation10 + $0x8] sm:$0xff] %v697
        %p700 = scmp.eq.s32.totalorder %s28, 3
        // Predicated region
        $region57: #{tpu_custom_call.1} parent=35 // pred_check
          %p701 = pneg %p700
        $region58: #{tpu_custom_call.1} parent=35 // pred_check_branch
          %703 = sbr.rel (%p701) target = $region60
        $region59: #{tpu_custom_call.1} parent=35 // pred_region
          %v704 = vld [vmem:[#allocation10] sm:$0xff]
          %v705 = vld [vmem:[#allocation10 + $0x8] sm:$0xff]
          %v706 = vld [vmem:[#allocation7] sm:$0x3]
          %v708 = vlaneseq
          %v709 = vshrl.u32 %v708, 7
          %v710 = vsub.s32 0, %v709
          %v711 = vrot.slane %v706, %v710
          %v712 = vlaneseq
          %v713 = vshrl.u32 %v712, 7
          %v714 = vsub.s32 1, %v713
          %v715 = vrot.slane %v706, %v714
          %v718 = vmul.f32 %v704, %v711
          %v719 = vmul.f32 %v705, %v715
          %v720 = vld [vmem:[#allocation8] sm:$0x3]
          %v722 = vlaneseq
          %v723 = vshrl.u32 %v722, 7
          %v724 = vsub.s32 0, %v723
          %v725 = vrot.slane %v720, %v724
          %v726 = vlaneseq
          %v727 = vshrl.u32 %v726, 7
          %v728 = vsub.s32 1, %v727
          %v729 = vrot.slane %v720, %v728
          %v732 = vadd.f32 %v718, %v725
          %v733 = vadd.f32 %v719, %v729
          %vm734 = vcmp.gt.f32.partialorder %v732, 0.0
          %vm735 = vcmp.gt.f32.partialorder %v733, 0.0
          %v736 = vmul.f32 %v732, 0.1
          %v737 = vmul.f32 %v733, 0.1
          %v738 = vsel %vm734, %v732, %v736
          %v739 = vsel %vm735, %v733, %v737
          %740 = vst [vmem:[#allocation10] sm:$0xff] %v738
          %741 = vst [vmem:[#allocation10 + $0x8] sm:$0xff] %v739
        $region60: #{tpu_custom_call.1} parent=35 // pred_fallthru
          _
        // Predicated region
        $region61: #{tpu_custom_call.1} parent=35 // pred_check
          %p742 = pneg %p159
        $region62: #{tpu_custom_call.1} parent=35 // pred_check_branch
          %744 = sbr.rel (%p742) target = $region64
        $region63: #{tpu_custom_call.1} parent=35 // pred_region
          %s745 = smul.u32 2, %s27
          %s747 = ssub.s32 256, 256
          %748 = vsyncadd [#allocation4], %s747
          %s749 = smul.addr %s745, 128
          %s750 = scalar_lea.hbm %s4, %s749
          %s752 = sshll.u32 [#allocation10], 4
          %s753 = int_to_ptr.vmem [resolvable:$true] %s752
          %755 = dma.vmem_to_hbm [thread:$0]  %s753, 256, %s750, [#allocation4]
        $region64: #{tpu_custom_call.1} parent=35 // pred_fallthru
          _
        // Predicated region
        $region65: #{tpu_custom_call.1} parent=35 // pred_check
          %p756 = pneg %p159
        $region66: #{tpu_custom_call.1} parent=35 // pred_check_branch
          %758 = sbr.rel (%p756) target = $region68
        $region67: #{tpu_custom_call.1} parent=35 // pred_region
          %759 = dma.done [#allocation4], 256
        $region68: #{tpu_custom_call.1} parent=35 // pred_fallthru
          _
      $region36: #{tpu_custom_call.1} parent=5 // pred_fallthru
        _
      %p760 = scmp.le.s32.totalorder 2, %s18
      // Predicated region
      $region69: #{tpu_custom_call.1} parent=5 // pred_check
        %p761 = pneg %p760
      $region70: #{tpu_custom_call.1} parent=5 // pred_check_branch
        %763 = sbr.rel (%p761) target = $region72
      $region71: #{tpu_custom_call.1} parent=5 // pred_region
        %s764 = ssub.s32 %s18, 2
      $region72: #{tpu_custom_call.1} parent=5 // pred_fallthru
        _
    $region6: #{tpu_custom_call.1} parent=1 // loop_footer
      %s22 = sadd.s32 1, %s18
    $region7: #{tpu_custom_call.1} parent=1 // loop_footer_branch
      %17 = sbr.rel target = $region3
    $region8: #{tpu_custom_call.1} parent=1 // loop_exit
      _
    %765 = vsyncpa [#allocation3], 1
    %s766 = scalar_lea.sflag [#allocation3], 1
    %767 = vsyncpa %s766, 1
    %768 = vsyncpa [#allocation6], 1
    %s769 = scalar_lea.sflag [#allocation6], 1
    %770 = vsyncpa %s769, 1
    %771 = vsyncpa [#allocation9], 1
    %772 = vsyncpa [#allocation4], 1
    %s773 = scalar_lea.sflag [#allocation4], 1
    %774 = vsyncpa %s773, 1

</llo_original>
